<compile_context>
chip_gen: v6e
topology: v6e:2x2x1
jax: 0.10.0
libtpu: 0.0.40
codegen_flags: <defaults>
</compile_context>

<pallas_src>
import functools

import jax
import jax.numpy as jnp
from jax import lax
from jax.experimental import pallas as pl
from jax.experimental.pallas import tpu as pltpu


def _gat_fused_kernel(x_ref, adj_ref, mask_ref, w_ref, a1_ref, a2_ref, out_ref,
                      *, n_head, n_type, d_head, neg_slope=0.2):
    # x_ref:    (1, E, in_dim)         bf16  node states for this batch element
    # adj_ref:  (1, E, E)              int8  edge-type labels in {0..n_type}
    # mask_ref: (1, E, 1)              f32   node mask
    # w_ref:    (in_dim, P*d_head)     bf16  P = n_head*n_type, pair p = hd*n_type + t
    # a1_ref:   (P*d_head, P)          bf16  block-diag a[:d] columns
    # a2_ref:   (P, P*d_head)          bf16  block-diag a[d:]^T rows
    # out_ref:  (1, E, n_head*d_head)  f32   lane-dense full-width output slab
    x = x_ref[0]                                        # (E, in_dim)
    adj = adj_ref[0].astype(jnp.int32)                  # (E, E), one int8->int32 widen
    mask = mask_ref[0]                                  # (E, 1)

    # One wide projection matmul for every (head, type) pair.
    h_all = jnp.dot(x, w_ref[...], preferred_element_type=jnp.float32)      # (E, P*d)
    h_bf = h_all.astype(jnp.bfloat16)

    # One matmul for all "source" score terms, one for all "target" score terms.
    s1_all = jnp.dot(h_bf, a1_ref[...], preferred_element_type=jnp.float32)  # (E, P)
    s2_all = lax.dot_general(a2_ref[...], h_bf, (((1,), (1,)), ((), ())),
                             preferred_element_type=jnp.float32)             # (P, E)

    E = adj.shape[0]
    neg_inf = jnp.float32(-1e30)

    head_outs = []
    for hd in range(n_head):                            # static -> unrolled at trace
        scores = jnp.full((E, E), neg_inf, dtype=jnp.float32)
        for t in range(n_type):                         # static -> unrolled at trace
            p = hd * n_type + t
            s1 = s1_all[:, p:p + 1]                     # (E, 1) static lane slice
            s2 = s2_all[p:p + 1, :]                     # (1, E) static sublane slice
            raw = s1 + s2                               # (E, E) rank-1 broadcast
            sc = jnp.maximum(raw, neg_slope * raw)      # LeakyReLU(0.2), slope < 1
            scores = jnp.where(adj == (t + 1), sc, scores)
        # adj == 0 entries stay at -1e30 (== torch's where(adj > 0, scores, -1e30))

        # row softmax; the divide is deferred until after the value matmul
        m = jnp.max(scores, axis=-1, keepdims=True)
        e = jnp.exp(scores - m)                         # (E, E)
        denom = jnp.sum(e, axis=-1, keepdims=True)      # (E, 1)

        # value path uses h from the LAST edge type only (exactly as in the torch code)
        p_last = hd * n_type + (n_type - 1)
        h_last = h_all[:, p_last * d_head:(p_last + 1) * d_head]            # (E, d)
        hm = (h_last * mask).astype(jnp.bfloat16)
        o = jnp.dot(e.astype(jnp.bfloat16), hm,
                    preferred_element_type=jnp.float32)                     # (E, d)
        o = o * pl.reciprocal(denom, approx=True)       # EUP reciprocal, (E, d) scale
        head_outs.append(jnp.maximum(o, 0.0))           # final ReLU (elementwise)

    out_ref[0] = jnp.concatenate(head_outs, axis=-1).astype(out_ref.dtype)


def _vmem_limit_bytes():
    # Default scoped VMEM (16/32 MiB) is far below physical 128 (v5e/v6e) / 64 (v7x)
    # MiB.  Use ~80% of physical, bounded to [32 MiB, 100 MiB].
    try:
        cap = int(pltpu.get_tpu_info().vmem_capacity_bytes)
    except Exception:
        cap = 64 * 1024 * 1024
    return int(min(max(cap * 4 // 5, 32 * 1024 * 1024), 100 * 1024 * 1024))


def attention_layer_forward(input_state, adj, node_mask, W_all, a_all):
    """AttentionLayer.forward (eval mode), config.graph == 'gat', q_attn=False.

    input_state: (N, E, in_dim) f32
    adj:         (N, E, E)      int-valued edge-type labels in [0, n_type]
    node_mask:   (N, E, 1)      f32
    W_all:       (n_head, n_type, in_dim, d_head) f32
    a_all:       (n_head, n_type, 2*d_head)       f32  (torch's (2d,1) `a` per type)
    returns:     (N, E, n_head * d_head) f32
    """
    N, E, in_dim = input_state.shape
    n_head, n_type, _, d_head = W_all.shape
    P = n_head * n_type
    hid_dim = n_head * d_head

    # bf16 MXU operands (f32 accumulation inside the kernel); int8 adjacency.
    x_bf = input_state.astype(jnp.bfloat16)
    adj_i8 = adj.astype(jnp.int8)
    mask_f32 = node_mask.astype(jnp.float32)

    # Pack all (head, type) projections into ONE wide RHS; pair p = hd*n_type + t.
    W_wide = jnp.transpose(W_all, (2, 0, 1, 3)).reshape(in_dim, P * d_head)
    W_wide = W_wide.astype(jnp.bfloat16)

    a1 = a_all[..., :d_head].reshape(P, d_head)          # a[:d]  per pair
    a2 = a_all[..., d_head:].reshape(P, d_head)          # a[d:]  per pair
    eye = jnp.eye(P, dtype=a_all.dtype)
    # Block-diagonal packings -> all pairs' s1 / s2 vectors from 2 matmuls total.
    a1_bd = (a1[:, :, None] * eye[:, None, :]).reshape(P * d_head, P).astype(jnp.bfloat16)
    a2_bd = (eye[:, :, None] * a2[None, :, :]).reshape(P, P * d_head).astype(jnp.bfloat16)

    kernel = functools.partial(_gat_fused_kernel, n_head=n_head, n_type=n_type,
                               d_head=d_head)

    out = pl.pallas_call(
        kernel,
        out_shape=jax.ShapeDtypeStruct((N, E, hid_dim), jnp.float32),
        grid_spec=pltpu.PrefetchScalarGridSpec(
            num_scalar_prefetch=0,
            grid=(N,),
            in_specs=[
                pl.BlockSpec((1, E, in_dim), lambda n: (n, 0, 0)),
                pl.BlockSpec((1, E, E), lambda n: (n, 0, 0)),
                pl.BlockSpec((1, E, 1), lambda n: (n, 0, 0)),
                # Weight blocks: index independent of n -> DMA'd once, reused
                # across all batch elements.
                pl.BlockSpec((in_dim, P * d_head), lambda n: (0, 0)),
                pl.BlockSpec((P * d_head, P), lambda n: (0, 0)),
                pl.BlockSpec((P, P * d_head), lambda n: (0, 0)),
            ],
            # Lane-dense full-width slab per batch element (no wrapper transpose).
            out_specs=pl.BlockSpec((1, E, hid_dim), lambda n: (n, 0, 0)),
        ),
        compiler_params=pltpu.CompilerParams(
            dimension_semantics=("parallel",),        # batch split across TCs on v7x
            vmem_limit_bytes=_vmem_limit_bytes(),
        ),
    )(x_bf, adj_i8, mask_f32, W_wide, a1_bd, a2_bd)

    return out


def _reference(input_state, adj, node_mask, W_all, a_all):
    """Pure-JAX port of the PyTorch forward (builds the full a_input like torch)."""
    n_head, n_type, _, d_head = W_all.shape
    N, E, _ = input_state.shape
    adj_f = adj.astype(jnp.float32)
    outs = []
    for hd in range(n_head):
        scores = jnp.zeros_like(adj_f)
        h = None
        for t in range(n_type):
            h = input_state @ W_all[hd, t]                                # (N, E, d)
            a = a_all[hd, t]                                              # (2d,)
            left = jnp.broadcast_to(h[:, :, None, :], (N, E, E, d_head))
            right = jnp.broadcast_to(h[:, None, :, :], (N, E, E, d_head))
            a_input = jnp.concatenate([left, right], axis=-1)             # (N, E, E, 2d)
            raw = jnp.einsum('neft,t->nef', a_input, a)
            sc = jnp.where(raw >= 0, raw, 0.2 * raw)
            scores = scores + jnp.where(adj_f == (t + 1), sc, 0.0)
        scores = jnp.where(adj_f > 0, scores, -1e30)
        coefs = jax.nn.softmax(scores, axis=-1)
        hm = h * node_mask
        outs.append(jnp.einsum('nef,nfd->ned', coefs, hm))
    return jax.nn.relu(jnp.concatenate(outs, axis=-1))


if __name__ == "__main__":
    N, E = 2, 16                  # batch, number of graph nodes
    in_dim, hid_dim, n_head = 32, 32, 2
    n_type = 2                    # config.num_edge_type
    d_head = hid_dim // n_head

    key = jax.random.PRNGKey(0)
    k_x, k_adj, k_mask, k_w, k_a = jax.random.split(key, 5)

    input_state = jax.random.normal(k_x, (N, E, in_dim), dtype=jnp.float32)
    adj = jax.random.randint(k_adj, (N, E, E), 0, n_type + 1).astype(jnp.int32)
    node_mask = (jax.random.uniform(k_mask, (N, E, 1)) < 0.8).astype(jnp.float32)
    W_all = 0.1 * jax.random.normal(k_w, (n_head, n_type, in_dim, d_head),
                                    dtype=jnp.float32)
    a_all = 0.1 * jax.random.normal(k_a, (n_head, n_type, 2 * d_head),
                                    dtype=jnp.float32)

    out = attention_layer_forward(input_state, adj, node_mask, W_all, a_all)
    out = jax.block_until_ready(out)

    ref = _reference(input_state, adj, node_mask, W_all, a_all)
    assert out.shape == (N, E, hid_dim)
    max_err = float(jnp.max(jnp.abs(out - ref)))
    # Tolerance covers bf16 MXU operands + approx EUP reciprocal in the kernel
    # vs the f32 pure-JAX reference.
    assert jnp.allclose(out, ref, atol=3e-2, rtol=3e-2), f"max abs err {max_err}"
    print("KERNEL_OK")
</pallas_src>

<mosaic_0001>
module attributes {stable_mosaic.version = 11 : i64} {
  func.func @_gat_fused_kernel(%arg0: i32, %arg1: memref<1x16x32xbf16, #tpu.memory_space<vmem>>, %arg2: memref<1x16x16xi8, #tpu.memory_space<vmem>>, %arg3: memref<1x16x1xf32, #tpu.memory_space<vmem>>, %arg4: memref<32x64xbf16, #tpu.memory_space<vmem>>, %arg5: memref<64x4xbf16, #tpu.memory_space<vmem>>, %arg6: memref<4x64xbf16, #tpu.memory_space<vmem>>, %arg7: memref<1x16x32xf32, #tpu.memory_space<vmem>>) attributes {dimension_semantics = [#tpu.dimension_semantics<parallel>], iteration_bounds = array<i64: 2>, scalar_prefetch = 0 : i64, scratch_operands = 0 : i64, tpu.core_type = #tpu.core_type<tc>, window_params = [{transform_indices = @transform_0, window_bounds = array<i64: 1, 16, 32>}, {transform_indices = @transform_1, window_bounds = array<i64: 1, 16, 16>}, {transform_indices = @transform_2, window_bounds = array<i64: 1, 16, 1>}, {pipeline_mode = #tpu.pipeline_mode<synchronous>, transform_indices = @transform_3, window_bounds = array<i64: 32, 64>}, {pipeline_mode = #tpu.pipeline_mode<synchronous>, transform_indices = @transform_4, window_bounds = array<i64: 64, 4>}, {pipeline_mode = #tpu.pipeline_mode<synchronous>, transform_indices = @transform_5, window_bounds = array<i64: 4, 64>}, {transform_indices = @transform_6, window_bounds = array<i64: 1, 16, 32>}]} {
    %c0 = arith.constant 0 : index
    %c0_0 = arith.constant 0 : index
    %c0_1 = arith.constant 0 : index
    %0 = vector.load %arg1[%c0, %c0_0, %c0_1] : memref<1x16x32xbf16, #tpu.memory_space<vmem>>, vector<1x16x32xbf16>
    %1 = vector.shape_cast %0 : vector<1x16x32xbf16> to vector<16x32xbf16>
    %c0_2 = arith.constant 0 : index
    %c0_3 = arith.constant 0 : index
    %c0_4 = arith.constant 0 : index
    %2 = vector.load %arg2[%c0_2, %c0_3, %c0_4] : memref<1x16x16xi8, #tpu.memory_space<vmem>>, vector<1x16x16xi8>
    %3 = vector.shape_cast %2 : vector<1x16x16xi8> to vector<16x16xi8>
    %4 = arith.extsi %3 : vector<16x16xi8> to vector<16x16xi32>
    %c0_5 = arith.constant 0 : index
    %c0_6 = arith.constant 0 : index
    %c0_7 = arith.constant 0 : index
    %5 = vector.load %arg3[%c0_5, %c0_6, %c0_7] : memref<1x16x1xf32, #tpu.memory_space<vmem>>, vector<1x16x1xf32>
    %6 = vector.shape_cast %5 : vector<1x16x1xf32> to vector<16x1xf32>
    %c0_8 = arith.constant 0 : index
    %c0_9 = arith.constant 0 : index
    %7 = vector.load %arg4[%c0_8, %c0_9] : memref<32x64xbf16, #tpu.memory_space<vmem>>, vector<32x64xbf16>
    %cst = arith.constant dense<0.000000e+00> : vector<16x64xf32>
    %8 = tpu.matmul %1, %7, %cst {dimension_numbers = #tpu.dot_dimension_numbers<[1], [0], [0], [1], [0, 0, 1, 1], [], []>} : vector<16x32xbf16>, vector<32x64xbf16>, vector<16x64xf32> -> vector<16x64xf32>
    %9 = arith.truncf %8 : vector<16x64xf32> to vector<16x64xbf16>
    %c0_10 = arith.constant 0 : index
    %c0_11 = arith.constant 0 : index
    %10 = vector.load %arg5[%c0_10, %c0_11] : memref<64x4xbf16, #tpu.memory_space<vmem>>, vector<64x4xbf16>
    %cst_12 = arith.constant dense<0.000000e+00> : vector<16x4xf32>
    %11 = tpu.matmul %9, %10, %cst_12 {dimension_numbers = #tpu.dot_dimension_numbers<[1], [0], [0], [1], [0, 0, 1, 1], [], []>} : vector<16x64xbf16>, vector<64x4xbf16>, vector<16x4xf32> -> vector<16x4xf32>
    %c0_13 = arith.constant 0 : index
    %c0_14 = arith.constant 0 : index
    %12 = vector.load %arg6[%c0_13, %c0_14] : memref<4x64xbf16, #tpu.memory_space<vmem>>, vector<4x64xbf16>
    %cst_15 = arith.constant dense<0.000000e+00> : vector<4x16xf32>
    %13 = tpu.matmul %12, %9, %cst_15 {dimension_numbers = #tpu.dot_dimension_numbers<[1], [1], [0], [0], [0, 0, 1, 0], [], []>} : vector<4x64xbf16>, vector<16x64xbf16>, vector<4x16xf32> -> vector<4x16xf32>
    %cst_16 = arith.constant -1.000000e+30 : f32
    %14 = vector.broadcast %cst_16 : f32 to vector<16x16xf32>
    %15 = vector.extract_strided_slice %11 {offsets = [0, 0], sizes = [16, 1], strides = [1, 1]} : vector<16x4xf32> to vector<16x1xf32>
    %16 = vector.extract_strided_slice %13 {offsets = [0, 0], sizes = [1, 16], strides = [1, 1]} : vector<4x16xf32> to vector<1x16xf32>
    %17 = vector.broadcast %15 : vector<16x1xf32> to vector<16x16xf32>
    %18 = vector.broadcast %16 : vector<1x16xf32> to vector<16x16xf32>
    %19 = arith.addf %17, %18 : vector<16x16xf32>
    %cst_17 = arith.constant 2.000000e-01 : f32
    %20 = vector.broadcast %cst_17 : f32 to vector<16x16xf32>
    %21 = arith.mulf %20, %19 : vector<16x16xf32>
    %22 = arith.maximumf %19, %21 : vector<16x16xf32>
    %c1_i32 = arith.constant 1 : i32
    %23 = vector.broadcast %c1_i32 : i32 to vector<16x16xi32>
    %24 = arith.cmpi eq, %4, %23 : vector<16x16xi32>
    %25 = arith.select %24, %22, %14 : vector<16x16xi1>, vector<16x16xf32>
    %26 = vector.extract_strided_slice %11 {offsets = [0, 1], sizes = [16, 1], strides = [1, 1]} : vector<16x4xf32> to vector<16x1xf32>
    %27 = vector.extract_strided_slice %13 {offsets = [1, 0], sizes = [1, 16], strides = [1, 1]} : vector<4x16xf32> to vector<1x16xf32>
    %28 = vector.broadcast %26 : vector<16x1xf32> to vector<16x16xf32>
    %29 = vector.broadcast %27 : vector<1x16xf32> to vector<16x16xf32>
    %30 = arith.addf %28, %29 : vector<16x16xf32>
    %cst_18 = arith.constant 2.000000e-01 : f32
    %31 = vector.broadcast %cst_18 : f32 to vector<16x16xf32>
    %32 = arith.mulf %31, %30 : vector<16x16xf32>
    %33 = arith.maximumf %30, %32 : vector<16x16xf32>
    %c2_i32 = arith.constant 2 : i32
    %34 = vector.broadcast %c2_i32 : i32 to vector<16x16xi32>
    %35 = arith.cmpi eq, %4, %34 : vector<16x16xi32>
    %36 = arith.select %35, %33, %25 : vector<16x16xi1>, vector<16x16xf32>
    %cst_19 = arith.constant dense<0xFF800000> : vector<16xf32>
    %37 = vector.multi_reduction <maximumf>, %36, %cst_19 [1] : vector<16x16xf32> to vector<16xf32>
    %38 = vector.shape_cast %37 : vector<16xf32> to vector<16x1xf32>
    %39 = vector.broadcast %38 : vector<16x1xf32> to vector<16x16xf32>
    %40 = arith.subf %36, %39 : vector<16x16xf32>
    %41 = math.exp %40 : vector<16x16xf32>
    %cst_20 = arith.constant dense<0.000000e+00> : vector<16xf32>
    %42 = vector.multi_reduction <add>, %41, %cst_20 [1] : vector<16x16xf32> to vector<16xf32>
    %43 = vector.shape_cast %42 : vector<16xf32> to vector<16x1xf32>
    %44 = vector.extract_strided_slice %8 {offsets = [0, 16], sizes = [16, 16], strides = [1, 1]} : vector<16x64xf32> to vector<16x16xf32>
    %45 = vector.broadcast %6 : vector<16x1xf32> to vector<16x16xf32>
    %46 = arith.mulf %44, %45 : vector<16x16xf32>
    %47 = arith.truncf %46 : vector<16x16xf32> to vector<16x16xbf16>
    %48 = arith.truncf %41 : vector<16x16xf32> to vector<16x16xbf16>
    %cst_21 = arith.constant dense<0.000000e+00> : vector<16x16xf32>
    %49 = tpu.matmul %48, %47, %cst_21 {dimension_numbers = #tpu.dot_dimension_numbers<[1], [0], [0], [1], [0, 0, 1, 1], [], []>} : vector<16x16xbf16>, vector<16x16xbf16>, vector<16x16xf32> -> vector<16x16xf32>
    %50 = tpu.reciprocal %43 {approx = true} : vector<16x1xf32> -> vector<16x1xf32>
    %51 = vector.broadcast %50 : vector<16x1xf32> to vector<16x16xf32>
    %52 = arith.mulf %49, %51 : vector<16x16xf32>
    %cst_22 = arith.constant 0.000000e+00 : f32
    %53 = vector.broadcast %cst_22 : f32 to vector<16x16xf32>
    %54 = arith.maximumf %52, %53 : vector<16x16xf32>
    %cst_23 = arith.constant -1.000000e+30 : f32
    %55 = vector.broadcast %cst_23 : f32 to vector<16x16xf32>
    %56 = vector.extract_strided_slice %11 {offsets = [0, 2], sizes = [16, 1], strides = [1, 1]} : vector<16x4xf32> to vector<16x1xf32>
    %57 = vector.extract_strided_slice %13 {offsets = [2, 0], sizes = [1, 16], strides = [1, 1]} : vector<4x16xf32> to vector<1x16xf32>
    %58 = vector.broadcast %56 : vector<16x1xf32> to vector<16x16xf32>
    %59 = vector.broadcast %57 : vector<1x16xf32> to vector<16x16xf32>
    %60 = arith.addf %58, %59 : vector<16x16xf32>
    %cst_24 = arith.constant 2.000000e-01 : f32
    %61 = vector.broadcast %cst_24 : f32 to vector<16x16xf32>
    %62 = arith.mulf %61, %60 : vector<16x16xf32>
    %63 = arith.maximumf %60, %62 : vector<16x16xf32>
    %c1_i32_25 = arith.constant 1 : i32
    %64 = vector.broadcast %c1_i32_25 : i32 to vector<16x16xi32>
    %65 = arith.cmpi eq, %4, %64 : vector<16x16xi32>
    %66 = arith.select %65, %63, %55 : vector<16x16xi1>, vector<16x16xf32>
    %67 = vector.extract_strided_slice %11 {offsets = [0, 3], sizes = [16, 1], strides = [1, 1]} : vector<16x4xf32> to vector<16x1xf32>
    %68 = vector.extract_strided_slice %13 {offsets = [3, 0], sizes = [1, 16], strides = [1, 1]} : vector<4x16xf32> to vector<1x16xf32>
    %69 = vector.broadcast %67 : vector<16x1xf32> to vector<16x16xf32>
    %70 = vector.broadcast %68 : vector<1x16xf32> to vector<16x16xf32>
    %71 = arith.addf %69, %70 : vector<16x16xf32>
    %cst_26 = arith.constant 2.000000e-01 : f32
    %72 = vector.broadcast %cst_26 : f32 to vector<16x16xf32>
    %73 = arith.mulf %72, %71 : vector<16x16xf32>
    %74 = arith.maximumf %71, %73 : vector<16x16xf32>
    %c2_i32_27 = arith.constant 2 : i32
    %75 = vector.broadcast %c2_i32_27 : i32 to vector<16x16xi32>
    %76 = arith.cmpi eq, %4, %75 : vector<16x16xi32>
    %77 = arith.select %76, %74, %66 : vector<16x16xi1>, vector<16x16xf32>
    %cst_28 = arith.constant dense<0xFF800000> : vector<16xf32>
    %78 = vector.multi_reduction <maximumf>, %77, %cst_28 [1] : vector<16x16xf32> to vector<16xf32>
    %79 = vector.shape_cast %78 : vector<16xf32> to vector<16x1xf32>
    %80 = vector.broadcast %79 : vector<16x1xf32> to vector<16x16xf32>
    %81 = arith.subf %77, %80 : vector<16x16xf32>
    %82 = math.exp %81 : vector<16x16xf32>
    %cst_29 = arith.constant dense<0.000000e+00> : vector<16xf32>
    %83 = vector.multi_reduction <add>, %82, %cst_29 [1] : vector<16x16xf32> to vector<16xf32>
    %84 = vector.shape_cast %83 : vector<16xf32> to vector<16x1xf32>
    %85 = vector.extract_strided_slice %8 {offsets = [0, 48], sizes = [16, 16], strides = [1, 1]} : vector<16x64xf32> to vector<16x16xf32>
    %86 = vector.broadcast %6 : vector<16x1xf32> to vector<16x16xf32>
    %87 = arith.mulf %85, %86 : vector<16x16xf32>
    %88 = arith.truncf %87 : vector<16x16xf32> to vector<16x16xbf16>
    %89 = arith.truncf %82 : vector<16x16xf32> to vector<16x16xbf16>
    %cst_30 = arith.constant dense<0.000000e+00> : vector<16x16xf32>
    %90 = tpu.matmul %89, %88, %cst_30 {dimension_numbers = #tpu.dot_dimension_numbers<[1], [0], [0], [1], [0, 0, 1, 1], [], []>} : vector<16x16xbf16>, vector<16x16xbf16>, vector<16x16xf32> -> vector<16x16xf32>
    %91 = tpu.reciprocal %84 {approx = true} : vector<16x1xf32> -> vector<16x1xf32>
    %92 = vector.broadcast %91 : vector<16x1xf32> to vector<16x16xf32>
    %93 = arith.mulf %90, %92 : vector<16x16xf32>
    %cst_31 = arith.constant 0.000000e+00 : f32
    %94 = vector.broadcast %cst_31 : f32 to vector<16x16xf32>
    %95 = arith.maximumf %93, %94 : vector<16x16xf32>
    %96 = tpu.concatenate %54, %95 in 1 : vector<16x16xf32>, vector<16x16xf32> -> vector<16x32xf32>
    %c0_32 = arith.constant 0 : index
    %c0_33 = arith.constant 0 : index
    %c0_34 = arith.constant 0 : index
    %97 = vector.load %arg7[%c0_32, %c0_33, %c0_34] : memref<1x16x32xf32, #tpu.memory_space<vmem>>, vector<1x16x32xf32>
    %98 = vector.shape_cast %97 : vector<1x16x32xf32> to vector<16x32xf32>
    %99 = vector.shape_cast %96 : vector<16x32xf32> to vector<1x16x32xf32>
    tpu.vector_store %arg7[%c0_32, %c0_33, %c0_34], %99 {strides = array<i32>} : memref<1x16x32xf32, #tpu.memory_space<vmem>>, vector<1x16x32xf32>,
    return
  }
  func.func @transform_0(%arg0: i32) -> (i32, i32, i32) {
    %c0_i32 = arith.constant 0 : i32
    %c0_i32_0 = arith.constant 0 : i32
    %c0_i32_1 = arith.constant 0 : i32
    return %arg0, %c0_i32, %c0_i32_0 : i32, i32, i32
  }
  func.func @transform_1(%arg0: i32) -> (i32, i32, i32) {
    %c0_i32 = arith.constant 0 : i32
    %c0_i32_0 = arith.constant 0 : i32
    %c0_i32_1 = arith.constant 0 : i32
    return %arg0, %c0_i32, %c0_i32_0 : i32, i32, i32
  }
  func.func @transform_2(%arg0: i32) -> (i32, i32, i32) {
    %c0_i32 = arith.constant 0 : i32
    %c0_i32_0 = arith.constant 0 : i32
    %c0_i32_1 = arith.constant 0 : i32
    return %arg0, %c0_i32, %c0_i32_0 : i32, i32, i32
  }
  func.func @transform_3(%arg0: i32) -> (i32, i32) {
    %c0_i32 = arith.constant 0 : i32
    %c0_i32_0 = arith.constant 0 : i32
    %c0_i32_1 = arith.constant 0 : i32
    return %c0_i32, %c0_i32_0 : i32, i32
  }
  func.func @transform_4(%arg0: i32) -> (i32, i32) {
    %c0_i32 = arith.constant 0 : i32
    %c0_i32_0 = arith.constant 0 : i32
    %c0_i32_1 = arith.constant 0 : i32
    return %c0_i32, %c0_i32_0 : i32, i32
  }
  func.func @transform_5(%arg0: i32) -> (i32, i32) {
    %c0_i32 = arith.constant 0 : i32
    %c0_i32_0 = arith.constant 0 : i32
    %c0_i32_1 = arith.constant 0 : i32
    return %c0_i32, %c0_i32_0 : i32, i32
  }
  func.func @transform_6(%arg0: i32) -> (i32, i32, i32) {
    %c0_i32 = arith.constant 0 : i32
    %c0_i32_0 = arith.constant 0 : i32
    %c0_i32_1 = arith.constant 0 : i32
    return %arg0, %c0_i32, %c0_i32_0 : i32, i32, i32
  }
}

</mosaic_0001>

<llo_original>
// kernel: tpu_custom_call.1
$region0: #{tpu_custom_call.1}
  #allocation0 [shape = 'u32[]', space=smem, size = 0x4, offset = 0x4, fixed_abs, tag = 'smem constant byte address 0x4 - core index']
  #allocation1 [shape = 'u32[144,128]{1,0:T(1,128)}', space=vmem, size = 0x12000, scoped, tag = 'internal scratch']
  %s0 = inlined_call_operand.vmem [shape: bf16[2,16,32], index: 0, kind: input, shape index: {}]
  %s1 = inlined_call_operand.vmem [shape: s8[2,16,16], index: 1, kind: input, shape index: {}]
  %s2 = inlined_call_operand.vmem [shape: f32[2,16,1], index: 2, kind: input, shape index: {}]
  %s3 = inlined_call_operand.vmem [shape: bf16[32,64], index: 3, kind: input, shape index: {}]
  %s4 = inlined_call_operand.vmem [shape: bf16[64,4], index: 4, kind: input, shape index: {}]
  %s5 = inlined_call_operand.vmem [shape: bf16[4,64], index: 5, kind: input, shape index: {}]
  %s6 = inlined_call_operand.hbm [shape: f32[2,16,32], index: 6, kind: output, shape index: {}]
  %s7 = sld [smem:[#allocation0]]
  $region57: #{tpu_custom_call.1} parent=0
    _
  %s9 = ssub.s32 1, %s7
  %s10 = scalar_select 0, %s9, %s7
  $region1: #{tpu_custom_call.1} parent=0
    #allocation2 [shape = 'u8[16384]{0}', space=vmem, size = 0x4000, scoped, tag = 'output window, operand 0']
    #allocation3 [shape = 's32[2]{0}', space=sflag, size = 0x8, scoped, tag = 'scoped memory for tpu_custom_call.1']
    %11 = vsyncpa [#allocation3], 0
    %s12 = scalar_lea.sflag [#allocation3], 1
    %13 = vsyncpa %s12, 0
    loop: start=0, step=1, limit=4
    $region2: #{tpu_custom_call.1} parent=1 // loop_pre_header
      _
    $region3: #{tpu_custom_call.1} parent=1 // loop_header
      %s15 = sphi 0, %s19
      %p16 = scmp.ge.s32.totalorder %s15, 4
      %s25 = sphi 0, %s27
      %s28 = sphi 0, %s25
      %s29 = sphi 0, %s28
      %s45 = sphi 0, %s29
      %s51 = sphi 0, %s53
      %s54 = sphi 0, %s51
      %s55 = sphi 0, %s54
      %s71 = sphi 0, %s55
      %s77 = sphi 0, %s79
      %s80 = sphi 0, %s77
      %s81 = sphi 0, %s80
      %s97 = sphi 0, %s81
      %s101 = sphi 0, %s101
      %s103 = sphi 0, %s101
      %s104 = sphi 0, %s103
      %s118 = sphi 0, %s104
      %s122 = sphi 0, %s122
      %s124 = sphi 0, %s122
      %s125 = sphi 0, %s124
      %s139 = sphi 0, %s125
      %s143 = sphi 0, %s143
      %s145 = sphi 0, %s143
      %s146 = sphi 0, %s145
      %s160 = sphi 0, %s146
      %s166 = sphi 0, %s168
      %s169 = sphi 0, %s166
      %s170 = sphi 0, %s169
      %s186 = sphi 0, %s170
    $region4: #{tpu_custom_call.1} parent=1 // loop_header_branch
      %18 = sbr.rel (%p16) target = $region8
    $region5: #{tpu_custom_call.1} parent=1 // loop_body
      %s20 = ssub.s32 %s15, 1
      %s21 = ssub.s32 %s15, 2
      %s22 = sadd.s32 %s15, 1
      %s23 = ssub.s32 %s15, %s22
      %p24 = scmp.eq.s32.totalorder %s23, 0
      %s26 = sadd.s32 %s25, 1
      %s27 = scalar_select %p24, %s25, %s26
      %p30 = pneg %p24
      %p31 = scmp.eq.s32.totalorder %s15, 1
      %p32 = por %p30, %p31
      %p33 = scmp.ne.s32.totalorder %s25, %s28
      %p34 = scmp.eq.s32.totalorder %s15, 0
      %p35 = por %p33, %p34
      %p36 = scmp.ne.s32.totalorder %s25, %s28
      %p37 = scmp.eq.s32.totalorder %s20, 1
      %p38 = por %p36, %p37
      %p39 = scmp.ne.s32.totalorder %s28, %s29
      %p40 = scmp.eq.s32.totalorder %s20, 0
      %p41 = por %p39, %p40
      %p42 = scmp.ne.s32.totalorder %s28, %s29
      %p43 = scmp.eq.s32.totalorder %s21, 1
      %p44 = por %p42, %p43
      %p46 = scmp.ne.s32.totalorder %s29, %s45
      %p47 = scmp.eq.s32.totalorder %s21, 0
      %p48 = por %p46, %p47
      %s49 = ssub.s32 %s15, %s22
      %p50 = scmp.eq.s32.totalorder %s49, 0
      %s52 = sadd.s32 %s51, 1
      %s53 = scalar_select %p50, %s51, %s52
      %p56 = pneg %p50
      %p57 = scmp.eq.s32.totalorder %s15, 1
      %p58 = por %p56, %p57
      %p59 = scmp.ne.s32.totalorder %s51, %s54
      %p60 = scmp.eq.s32.totalorder %s15, 0
      %p61 = por %p59, %p60
      %p62 = scmp.ne.s32.totalorder %s51, %s54
      %p63 = scmp.eq.s32.totalorder %s20, 1
      %p64 = por %p62, %p63
      %p65 = scmp.ne.s32.totalorder %s54, %s55
      %p66 = scmp.eq.s32.totalorder %s20, 0
      %p67 = por %p65, %p66
      %p68 = scmp.ne.s32.totalorder %s54, %s55
      %p69 = scmp.eq.s32.totalorder %s21, 1
      %p70 = por %p68, %p69
      %p72 = scmp.ne.s32.totalorder %s55, %s71
      %p73 = scmp.eq.s32.totalorder %s21, 0
      %p74 = por %p72, %p73
      %s75 = ssub.s32 %s15, %s22
      %p76 = scmp.eq.s32.totalorder %s75, 0
      %s78 = sadd.s32 %s77, 1
      %s79 = scalar_select %p76, %s77, %s78
      %p82 = pneg %p76
      %p83 = scmp.eq.s32.totalorder %s15, 1
      %p84 = por %p82, %p83
      %p85 = scmp.ne.s32.totalorder %s77, %s80
      %p86 = scmp.eq.s32.totalorder %s15, 0
      %p87 = por %p85, %p86
      %p88 = scmp.ne.s32.totalorder %s77, %s80
      %p89 = scmp.eq.s32.totalorder %s20, 1
      %p90 = por %p88, %p89
      %p91 = scmp.ne.s32.totalorder %s80, %s81
      %p92 = scmp.eq.s32.totalorder %s20, 0
      %p93 = por %p91, %p92
      %p94 = scmp.ne.s32.totalorder %s80, %s81
      %p95 = scmp.eq.s32.totalorder %s21, 1
      %p96 = por %p94, %p95
      %p98 = scmp.ne.s32.totalorder %s81, %s97
      %p99 = scmp.eq.s32.totalorder %s21, 0
      %p100 = por %p98, %p99
      %s102 = sadd.s32 %s101, 1
      %p105 = scmp.eq.s32.totalorder %s15, 1
      %p106 = scmp.ne.s32.totalorder %s101, %s103
      %p107 = scmp.eq.s32.totalorder %s15, 0
      %p108 = por %p106, %p107
      %p109 = scmp.ne.s32.totalorder %s101, %s103
      %p110 = scmp.eq.s32.totalorder %s20, 1
      %p111 = por %p109, %p110
      %p112 = scmp.ne.s32.totalorder %s103, %s104
      %p113 = scmp.eq.s32.totalorder %s20, 0
      %p114 = por %p112, %p113
      %p115 = scmp.ne.s32.totalorder %s103, %s104
      %p116 = scmp.eq.s32.totalorder %s21, 1
      %p117 = por %p115, %p116
      %p119 = scmp.ne.s32.totalorder %s104, %s118
      %p120 = scmp.eq.s32.totalorder %s21, 0
      %p121 = por %p119, %p120
      %s123 = sadd.s32 %s122, 1
      %p126 = scmp.eq.s32.totalorder %s15, 1
      %p127 = scmp.ne.s32.totalorder %s122, %s124
      %p128 = scmp.eq.s32.totalorder %s15, 0
      %p129 = por %p127, %p128
      %p130 = scmp.ne.s32.totalorder %s122, %s124
      %p131 = scmp.eq.s32.totalorder %s20, 1
      %p132 = por %p130, %p131
      %p133 = scmp.ne.s32.totalorder %s124, %s125
      %p134 = scmp.eq.s32.totalorder %s20, 0
      %p135 = por %p133, %p134
      %p136 = scmp.ne.s32.totalorder %s124, %s125
      %p137 = scmp.eq.s32.totalorder %s21, 1
      %p138 = por %p136, %p137
      %p140 = scmp.ne.s32.totalorder %s125, %s139
      %p141 = scmp.eq.s32.totalorder %s21, 0
      %p142 = por %p140, %p141
      %s144 = sadd.s32 %s143, 1
      %p147 = scmp.eq.s32.totalorder %s15, 1
      %p148 = scmp.ne.s32.totalorder %s143, %s145
      %p149 = scmp.eq.s32.totalorder %s15, 0
      %p150 = por %p148, %p149
      %p151 = scmp.ne.s32.totalorder %s143, %s145
      %p152 = scmp.eq.s32.totalorder %s20, 1
      %p153 = por %p151, %p152
      %p154 = scmp.ne.s32.totalorder %s145, %s146
      %p155 = scmp.eq.s32.totalorder %s20, 0
      %p156 = por %p154, %p155
      %p157 = scmp.ne.s32.totalorder %s145, %s146
      %p158 = scmp.eq.s32.totalorder %s21, 1
      %p159 = por %p157, %p158
      %p161 = scmp.ne.s32.totalorder %s146, %s160
      %p162 = scmp.eq.s32.totalorder %s21, 0
      %p163 = por %p161, %p162
      %s164 = ssub.s32 %s15, %s22
      %p165 = scmp.eq.s32.totalorder %s164, 0
      %s167 = sadd.s32 %s166, 1
      %s168 = scalar_select %p165, %s166, %s167
      %p171 = pneg %p165
      %p172 = scmp.eq.s32.totalorder %s15, 1
      %p173 = por %p171, %p172
      %p174 = scmp.ne.s32.totalorder %s166, %s169
      %p175 = scmp.eq.s32.totalorder %s15, 0
      %p176 = por %p174, %p175
      %p177 = scmp.ne.s32.totalorder %s166, %s169
      %p178 = scmp.eq.s32.totalorder %s20, 1
      %p179 = por %p177, %p178
      %p180 = scmp.ne.s32.totalorder %s169, %s170
      %p181 = scmp.eq.s32.totalorder %s20, 0
      %p182 = por %p180, %p181
      %p183 = scmp.ne.s32.totalorder %s169, %s170
      %p184 = scmp.eq.s32.totalorder %s21, 1
      %p185 = por %p183, %p184
      %p187 = scmp.ne.s32.totalorder %s170, %s186
      %p188 = scmp.eq.s32.totalorder %s21, 0
      %p189 = por %p187, %p188
      %p190 = scmp.le.s32.totalorder 1, %s15
      %p191 = scmp.lt.s32.totalorder %s15, 3
      %p192 = pnand %p190, %p191
      %p193 = pneg %p192
      // Predicated region
      $region9: #{tpu_custom_call.1} parent=5 // pred_check
        _
      $region10: #{tpu_custom_call.1} parent=5 // pred_check_branch
        %195 = sbr.rel (%p192) target = $region12
      $region11: #{tpu_custom_call.1} parent=5 // pred_region
        %s196 = ssub.s32 %s15, 1
        // Predicated region
        $region13: #{tpu_custom_call.1} parent=11 // pred_check
          %p197 = pneg %p114
        $region14: #{tpu_custom_call.1} parent=11 // pred_check_branch
          %199 = sbr.rel (%p197) target = $region16
        $region15: #{tpu_custom_call.1} parent=11 // pred_region
          _
        $region16: #{tpu_custom_call.1} parent=11 // pred_fallthru
          _
        // Predicated region
        $region17: #{tpu_custom_call.1} parent=11 // pred_check
          %p200 = pneg %p135
        $region18: #{tpu_custom_call.1} parent=11 // pred_check_branch
          %202 = sbr.rel (%p200) target = $region20
        $region19: #{tpu_custom_call.1} parent=11 // pred_region
          _
        $region20: #{tpu_custom_call.1} parent=11 // pred_fallthru
          _
        // Predicated region
        $region21: #{tpu_custom_call.1} parent=11 // pred_check
          %p203 = pneg %p156
        $region22: #{tpu_custom_call.1} parent=11 // pred_check_branch
          %205 = sbr.rel (%p203) target = $region24
        $region23: #{tpu_custom_call.1} parent=11 // pred_region
          _
        $region24: #{tpu_custom_call.1} parent=11 // pred_fallthru
          _
      $region12: #{tpu_custom_call.1} parent=5 // pred_fallthru
        _
      %p206 = scmp.lt.s32.totalorder %s15, 2
      // Predicated region
      $region25: #{tpu_custom_call.1} parent=5 // pred_check
        %p207 = pneg %p206
      $region26: #{tpu_custom_call.1} parent=5 // pred_check_branch
        %209 = sbr.rel (%p207) target = $region28
      $region27: #{tpu_custom_call.1} parent=5 // pred_region
        // Predicated region
        $region29: #{tpu_custom_call.1} parent=27 // pred_check
          %p210 = pneg %p35
        $region30: #{tpu_custom_call.1} parent=27 // pred_check_branch
          %212 = sbr.rel (%p210) target = $region32
        $region31: #{tpu_custom_call.1} parent=27 // pred_region
          %p213 = scmp.lt.s32.totalorder %s15, 1
          %s214 = scalar_select %p213, %s15, 1
          %s215 = smul.addr %s214, 2
          %s216 = smul.addr %s215, 4
          %s217 = scalar_lea.vmem %s0, %s216
        $region32: #{tpu_custom_call.1} parent=27 // pred_fallthru
          _
        // Predicated region
        $region33: #{tpu_custom_call.1} parent=27 // pred_check
          %p218 = pneg %p61
        $region34: #{tpu_custom_call.1} parent=27 // pred_check_branch
          %220 = sbr.rel (%p218) target = $region36
        $region35: #{tpu_custom_call.1} parent=27 // pred_region
          %p221 = scmp.lt.s32.totalorder %s15, 1
          %s222 = scalar_select %p221, %s15, 1
          %s223 = smul.addr %s222, 2
          %s224 = smul.addr %s223, 2
          %s225 = scalar_lea.vmem %s1, %s224
        $region36: #{tpu_custom_call.1} parent=27 // pred_fallthru
          _
        // Predicated region
        $region37: #{tpu_custom_call.1} parent=27 // pred_check
          %p226 = pneg %p87
        $region38: #{tpu_custom_call.1} parent=27 // pred_check_branch
          %228 = sbr.rel (%p226) target = $region40
        $region39: #{tpu_custom_call.1} parent=27 // pred_region
          %p229 = scmp.lt.s32.totalorder %s15, 1
          %s230 = scalar_select %p229, %s15, 1
          %s231 = smul.addr %s230, 2
          %s232 = smul.addr %s231, 8
          %s233 = scalar_lea.vmem %s2, %s232
        $region40: #{tpu_custom_call.1} parent=27 // pred_fallthru
          _
      $region28: #{tpu_custom_call.1} parent=5 // pred_fallthru
        _
      %p234 = scmp.le.s32.totalorder 1, %s15
      %p235 = scmp.lt.s32.totalorder %s15, 3
      %p236 = pnand %p234, %p235
      %p237 = pneg %p236
      // Predicated region
      $region41: #{tpu_custom_call.1} parent=5 // pred_check
        _
      $region42: #{tpu_custom_call.1} parent=5 // pred_check_branch
        %239 = sbr.rel (%p236) target = $region44
      $region43: #{tpu_custom_call.1} parent=5 // pred_region
        %s240 = ssub.s32 %s15, 1
        %p241 = scmp.lt.s32.totalorder %s20, 1
        %s242 = scalar_select %p241, %s20, 1
        %s243 = smul.addr %s242, 2
        %s244 = smul.addr %s243, 4
        %s245 = scalar_lea.vmem %s0, %s244
        %p246 = pneg %p41
        %p247 = pneg %p38
        %p248 = scmp.lt.s32.totalorder %s20, 1
        %s249 = scalar_select %p248, %s20, 1
        %s250 = smul.addr %s249, 2
        %s251 = smul.addr %s250, 2
        %s252 = scalar_lea.vmem %s1, %s251
        %p253 = pneg %p67
        %p254 = pneg %p64
        %p255 = scmp.lt.s32.totalorder %s20, 1
        %s256 = scalar_select %p255, %s20, 1
        %s257 = smul.addr %s256, 2
        %s258 = smul.addr %s257, 8
        %s259 = scalar_lea.vmem %s2, %s258
        %p260 = pneg %p93
        %p261 = pneg %p90
        %p262 = pneg %p114
        %p263 = pneg %p111
        %p264 = pneg %p135
        %p265 = pneg %p132
        %p266 = pneg %p156
        %p267 = pneg %p153
        %p268 = pneg %p182
        %p269 = pneg %p179
        %s270 = sand.u32 %s169, 1
        %s271 = scalar_lea.sflag [#allocation3], %s270
        %s272 = sand.u32 %s169, 1
        %s273 = smul.addr %s272, 16
        %s274 = scalar_lea.vmem [#allocation2], %s273
        %p275 = scmp.lt.s32.totalorder %s20, 1
        %s276 = scalar_select %p275, %s20, 1
        %s277 = smul.addr %s276, 2
        %s278 = smul.addr %s277, 4
        %s279 = scalar_lea.vmem %s0, %s278
        %p280 = scmp.lt.s32.totalorder %s20, 1
        %s281 = scalar_select %p280, %s20, 1
        %s282 = smul.addr %s281, 2
        %s283 = smul.addr %s282, 2
        %s284 = scalar_lea.vmem %s1, %s283
        %p285 = scmp.lt.s32.totalorder %s20, 1
        %s286 = scalar_select %p285, %s20, 1
        %s287 = smul.addr %s286, 2
        %s288 = smul.addr %s287, 8
        %s289 = scalar_lea.vmem %s2, %s288
        %v291 = vld [vmem:[%s279] sm:$0xf]
        %v292 = vld [vmem:[%s279 + $0x4] sm:$0xf]
        %v293 = vld [vmem:[%s284] sm:$0x3]
        %v294 = vld [vmem:[%s284 + $0x2] sm:$0x3]
        %v295 = vunpack.c.0.s8 %v293
        %v296 = vunpack.c.0.s8 %v294
        %v297 = vld [vmem:[%s289] sm:$0xff]
        %v298 = vld [vmem:[%s289 + $0x8] sm:$0xff]
        %v299 = vld [vmem:[%s3] sm:$0xf]
        %v300 = vld [vmem:[%s3 + $0x4] sm:$0xf]
        %v301 = vld [vmem:[%s3 + $0x8] sm:$0xf]
        %v302 = vld [vmem:[%s3 + $0xc] sm:$0xf]
        %v305 = vunpack.c.l.b16 %v291
        %v306 = vunpack.c.l.b16 %v292
        %v307 = vpack.c.b16 %v306, %v305
        %v312 = vunpack.c.l.b16 %v299
        %v313 = vunpack.c.l.b16 %v300
        %v314 = vunpack.c.l.b16 %v301
        %v315 = vunpack.c.l.b16 %v302
        %v316 = vpack.c.b16 %v313, %v312
        %v317 = vpack.c.b16 %v315, %v314
        %vm320 = vcmask 261120
        %v322 = vsel %vm320, %v307, 0
        %324 = vmatprep.subr.bf16.mxu0 0
        %325 = vmatpush1.bf16.msra.mxu0 0
        %326 = vmatprep.subr.bf16.mxu0 0
        %327 = vmatpush1.bf16.msra.mxu0 0
        %328 = vmatprep.subr.bf16.mxu0 0
        %329 = vmatpush1.bf16.msra.mxu0 0
        %330 = vmatprep.subr.bf16.mxu0 0
        %331 = vmatpush1.bf16.msra.mxu0 0
        %332 = vmatprep.subr.bf16.mxu0 0
        %333 = vmatpush1.bf16.msra.mxu0 0
        %334 = vmatprep.subr.bf16.mxu0 0
        %335 = vmatpush1.bf16.msra.mxu0 0
        %336 = vmatprep.subr.bf16.mxu0 0
        %337 = vmatpush1.bf16.msra.mxu0 %v317
        %338 = vmatprep.subr.bf16.mxu0 0
        %339 = vmatpush1.bf16.msra.mxu0 %v316
        %340 = vmatprep.subr.bf16.mxu0 0
        %341 = vmatpush2.bf16.msra.mxu0 0
        %342 = vmatprep.subr.bf16.mxu0 0
        %343 = vmatpush2.bf16.msra.mxu0 0
        %344 = vmatprep.subr.bf16.mxu0 0
        %345 = vmatpush2.bf16.msra.mxu0 0
        %346 = vmatprep.subr.bf16.mxu0 0
        %347 = vmatpush2.bf16.msra.mxu0 0
        %348 = vmatprep.subr.bf16.mxu0 0
        %349 = vmatpush2.bf16.msra.mxu0 0
        %350 = vmatprep.subr.bf16.mxu0 0
        %351 = vmatpush2.bf16.msra.mxu0 0
        %352 = vmatprep.subr.bf16.mxu0 0
        %353 = vmatpush2.bf16.msra.mxu0 0
        %354 = vmatprep.subr.bf16.mxu0 0
        %355 = vmatpush2.bf16.msra.mxu0 0
        %356 = vmatprep.mubr.bf16.mxu0 0
        %357 = vmatmul.mubr.bf16.gmra.mxu0 %v322
        %v358 = vpop.f32.mrf.mxu0
        %v359 = vadd.f32 0.0, %v358
        %v360 = vpop.f32.mrf.mxu0
        %v361 = vpop.f32.mrf.mxu0
        %v362 = vadd.f32 0.0, %v361
        %v363 = vpop.f32.mrf.mxu0
        %364 = vdwg.mxu0
        %v365 = vpack.c.bf16 %v362, %v359
        %v366 = vld [vmem:[%s4] sm:$0xf]
        %v367 = vld [vmem:[%s4 + $0x4] sm:$0xf]
        %v368 = vld [vmem:[%s4 + $0x8] sm:$0xf]
        %v369 = vld [vmem:[%s4 + $0xc] sm:$0xf]
        %v370 = vld [vmem:[%s4 + $0x10] sm:$0xf]
        %v371 = vld [vmem:[%s4 + $0x14] sm:$0xf]
        %v372 = vld [vmem:[%s4 + $0x18] sm:$0xf]
        %v373 = vld [vmem:[%s4 + $0x1c] sm:$0xf]
        %v382 = vunpack.c.l.b16 %v366
        %v383 = vunpack.c.l.b16 %v367
        %v384 = vunpack.c.l.b16 %v368
        %v385 = vunpack.c.l.b16 %v369
        %v386 = vunpack.c.l.b16 %v370
        %v387 = vunpack.c.l.b16 %v371
        %v388 = vunpack.c.l.b16 %v372
        %v389 = vunpack.c.l.b16 %v373
        %v390 = vpack.c.b16 %v383, %v382
        %v391 = vpack.c.b16 %v385, %v384
        %v392 = vpack.c.b16 %v387, %v386
        %v393 = vpack.c.b16 %v389, %v388
        %vm398 = vcmask 523264
        %v400 = vsel %vm398, %v365, 0
        %402 = vmatprep.subr.bf16.mxu0 0
        %403 = vmatpush1.bf16.msra.mxu0 0
        %404 = vmatprep.subr.bf16.mxu0 0
        %405 = vmatpush1.bf16.msra.mxu0 0
        %406 = vmatprep.subr.bf16.mxu0 0
        %407 = vmatpush1.bf16.msra.mxu0 0
        %408 = vmatprep.subr.bf16.mxu0 0
        %409 = vmatpush1.bf16.msra.mxu0 0
        %410 = vmatprep.subr.bf16.mxu0 0
        %411 = vmatpush1.bf16.msra.mxu0 %v393
        %412 = vmatprep.subr.bf16.mxu0 0
        %413 = vmatpush1.bf16.msra.mxu0 %v392
        %414 = vmatprep.subr.bf16.mxu0 0
        %415 = vmatpush1.bf16.msra.mxu0 %v391
        %416 = vmatprep.subr.bf16.mxu0 0
        %417 = vmatpush1.bf16.msra.mxu0 %v390
        %418 = vmatprep.subr.bf16.mxu0 0
        %419 = vmatpush2.bf16.msra.mxu0 0
        %420 = vmatprep.subr.bf16.mxu0 0
        %421 = vmatpush2.bf16.msra.mxu0 0
        %422 = vmatprep.subr.bf16.mxu0 0
        %423 = vmatpush2.bf16.msra.mxu0 0
        %424 = vmatprep.subr.bf16.mxu0 0
        %425 = vmatpush2.bf16.msra.mxu0 0
        %426 = vmatprep.subr.bf16.mxu0 0
        %427 = vmatpush2.bf16.msra.mxu0 0
        %428 = vmatprep.subr.bf16.mxu0 0
        %429 = vmatpush2.bf16.msra.mxu0 0
        %430 = vmatprep.subr.bf16.mxu0 0
        %431 = vmatpush2.bf16.msra.mxu0 0
        %432 = vmatprep.subr.bf16.mxu0 0
        %433 = vmatpush2.bf16.msra.mxu0 0
        %434 = vmatprep.mubr.bf16.mxu0 0
        %435 = vmatmul.mubr.bf16.gmra.mxu0 %v400
        %v436 = vpop.f32.mrf.mxu0
        %v437 = vadd.f32 0.0, %v436
        %v438 = vpop.f32.mrf.mxu0
        %v439 = vpop.f32.mrf.mxu0
        %v440 = vadd.f32 0.0, %v439
        %v441 = vpop.f32.mrf.mxu0
        %442 = vdwg.mxu0
        %v443 = vld [vmem:[%s5] sm:$0x3]
        %v445 = vsel %vm398, %v443, 0
        %447 = vmatprep.subr.bf16.mxu0 0
        %448 = vmatpush1.bf16.xpose.msra.mxu0 0
        %449 = vmatprep.subr.bf16.mxu0 0
        %450 = vmatpush1.bf16.xpose.msra.mxu0 0
        %451 = vmatprep.subr.bf16.mxu0 0
        %452 = vmatpush1.bf16.xpose.msra.mxu0 0
        %453 = vmatprep.subr.bf16.mxu0 0
        %454 = vmatpush1.bf16.xpose.msra.mxu0 0
        %455 = vmatprep.subr.bf16.mxu0 0
        %456 = vmatpush1.bf16.xpose.msra.mxu0 0
        %457 = vmatprep.subr.bf16.mxu0 0
        %458 = vmatpush1.bf16.xpose.msra.mxu0 0
        %459 = vmatprep.subr.bf16.mxu0 0
        %460 = vmatpush1.bf16.xpose.msra.mxu0 0
        %461 = vmatprep.subr.bf16.mxu0 0
        %462 = vmatpush1.bf16.xpose.msra.mxu0 %v400
        %463 = vmatprep.subr.bf16.mxu0 0
        %464 = vmatpush2.bf16.xpose.msra.mxu0 0
        %465 = vmatprep.subr.bf16.mxu0 0
        %466 = vmatpush2.bf16.xpose.msra.mxu0 0
        %467 = vmatprep.subr.bf16.mxu0 0
        %468 = vmatpush2.bf16.xpose.msra.mxu0 0
        %469 = vmatprep.subr.bf16.mxu0 0
        %470 = vmatpush2.bf16.xpose.msra.mxu0 0
        %471 = vmatprep.subr.bf16.mxu0 0
        %472 = vmatpush2.bf16.xpose.msra.mxu0 0
        %473 = vmatprep.subr.bf16.mxu0 0
        %474 = vmatpush2.bf16.xpose.msra.mxu0 0
        %475 = vmatprep.subr.bf16.mxu0 0
        %476 = vmatpush2.bf16.xpose.msra.mxu0 0
        %477 = vmatprep.subr.bf16.mxu0 0
        %478 = vmatpush2.bf16.xpose.msra.mxu0 0
        %479 = vmatprep.mubr.bf16.mxu0 0
        %480 = vmatmul.mubr.bf16.gmra.mxu0 %v445
        %v481 = vpop.f32.mrf.mxu0
        %v482 = vadd.f32 0.0, %v481
        %v483 = vpop.f32.mrf.mxu0
        %v484 = vpop.f32.mrf.mxu0
        %v485 = vpop.f32.mrf.mxu0
        %486 = vdwg.mxu0
        %488 = vset.pattern.permute.xlu0 0
        %489 = vperm.xlu0 %488, %v437
        %v490 = vpop.permute.xlu0 %489
        %493 = vset.pattern.permute.xlu0 0
        %494 = vperm.xlu0 %493, %v440
        %v495 = vpop.permute.xlu0 %494
        %v497 = vlaneseq
        %v498 = vshrl.u32 %v497, 7
        %v499 = vsub.s32 0, %v498
        %v500 = vrot.slane %v482, %v499
        %v501 = vadd.f32 %v490, %v500
        %v502 = vadd.f32 %v495, %v500
        %v503 = vmul.f32 %v501, 0.2
        %v504 = vmul.f32 %v502, 0.2
        %v505 = vmax.f32 %v501, %v503
        %v506 = vmax.f32 %v502, %v504
        %vm507 = vcmp.eq.s32.totalorder %v295, 1
        %vm508 = vcmp.eq.s32.totalorder %v296, 1
        %v509 = vsel %vm507, %v505, -1e+30
        %v510 = vsel %vm508, %v506, -1e+30
        %511 = vset.pattern.permute.xlu0 1
        %512 = vperm.xlu0 %511, %v437
        %v513 = vpop.permute.xlu0 %512
        %515 = vset.pattern.permute.xlu0 1
        %516 = vperm.xlu0 %515, %v440
        %v517 = vpop.permute.xlu0 %516
        %v519 = vlaneseq
        %v520 = vshrl.u32 %v519, 7
        %v521 = vsub.s32 1, %v520
        %v522 = vrot.slane %v482, %v521
        %v523 = vadd.f32 %v513, %v522
        %v524 = vadd.f32 %v517, %v522
        %v525 = vmul.f32 %v523, 0.2
        %v526 = vmul.f32 %v524, 0.2
        %v527 = vmax.f32 %v523, %v525
        %v528 = vmax.f32 %v524, %v526
        %vm529 = vcmp.eq.s32.totalorder %v295, 2
        %vm530 = vcmp.eq.s32.totalorder %v296, 2
        %v531 = vsel %vm529, %v527, %v509
        %v532 = vsel %vm530, %v528, %v510
        %vm533 = vcmask 130048
        %v534 = vsel %vm533, %v531, -inf
        %535 = vmax.xlane.f32.xlu0 %v534
        %v536 = vpop.xlane.xlu0 %535
        %v537 = vsel %vm533, %v532, -inf
        %538 = vmax.xlane.f32.xlu0 %v537
        %v539 = vpop.xlane.xlu0 %538
        %v540 = vsub.f32 %v531, %v536
        %v541 = vsub.f32 %v532, %v539
        %v542 = vmul.f32 %v540, 1.442695
        %v543 = vpow.pop %v542
        %v544 = vmul.f32 %v541, 1.442695
        %v545 = vpow.pop %v544
        %v546 = vsel %vm533, %v543, 0.0
        %547 = vadd.xlane.f32.xlu0 %v546
        %v548 = vpop.xlane.xlu0 %547
        %v549 = vsel %vm533, %v545, 0.0
        %550 = vadd.xlane.f32.xlu0 %v549
        %v551 = vpop.xlane.xlu0 %550
        %553 = vset.pattern.permute.xlu0 0
        %554 = vperm.xlu0 %553, %v297
        %v555 = vpop.permute.xlu0 %554
        %558 = vset.pattern.permute.xlu0 0
        %559 = vperm.xlu0 %558, %v298
        %v560 = vpop.permute.xlu0 %559
        %v562 = vmul.f32 %v359, %v555
        %v563 = vmul.f32 %v362, %v560
        %v564 = vpack.c.bf16 %v563, %v562
        %v565 = vpack.c.bf16 %v545, %v543
        %567 = vrot.lane.b32.xlu0 %v564, 112
        %v568 = vpop.permute.xlu0 %567
        %v571 = vsel %vm533, %v565, 0
        %573 = vmatprep.subr.bf16.mxu0 0
        %574 = vmatpush1.bf16.msra.mxu0 0
        %575 = vmatprep.subr.bf16.mxu0 0
        %576 = vmatpush1.bf16.msra.mxu0 0
        %577 = vmatprep.subr.bf16.mxu0 0
        %578 = vmatpush1.bf16.msra.mxu0 0
        %579 = vmatprep.subr.bf16.mxu0 0
        %580 = vmatpush1.bf16.msra.mxu0 0
        %581 = vmatprep.subr.bf16.mxu0 0
        %582 = vmatpush1.bf16.msra.mxu0 0
        %583 = vmatprep.subr.bf16.mxu0 0
        %584 = vmatpush1.bf16.msra.mxu0 0
        %585 = vmatprep.subr.bf16.mxu0 0
        %586 = vmatpush1.bf16.msra.mxu0 0
        %587 = vmatprep.subr.bf16.mxu0 0
        %588 = vmatpush1.bf16.msra.mxu0 %v568
        %589 = vmatprep.subr.bf16.mxu0 0
        %590 = vmatpush2.bf16.msra.mxu0 0
        %591 = vmatprep.subr.bf16.mxu0 0
        %592 = vmatpush2.bf16.msra.mxu0 0
        %593 = vmatprep.subr.bf16.mxu0 0
        %594 = vmatpush2.bf16.msra.mxu0 0
        %595 = vmatprep.subr.bf16.mxu0 0
        %596 = vmatpush2.bf16.msra.mxu0 0
        %597 = vmatprep.subr.bf16.mxu0 0
        %598 = vmatpush2.bf16.msra.mxu0 0
        %599 = vmatprep.subr.bf16.mxu0 0
        %600 = vmatpush2.bf16.msra.mxu0 0
        %601 = vmatprep.subr.bf16.mxu0 0
        %602 = vmatpush2.bf16.msra.mxu0 0
        %603 = vmatprep.subr.bf16.mxu0 0
        %604 = vmatpush2.bf16.msra.mxu0 0
        %605 = vmatprep.mubr.bf16.mxu0 0
        %606 = vmatmul.mubr.bf16.gmra.mxu0 %v571
        %v607 = vpop.f32.mrf.mxu0
        %v608 = vadd.f32 0.0, %v607
        %v609 = vpop.f32.mrf.mxu0
        %v610 = vpop.f32.mrf.mxu0
        %v611 = vadd.f32 0.0, %v610
        %v612 = vpop.f32.mrf.mxu0
        %613 = vdwg.mxu0
        %v614 = vrcp.pop %v548
        %v615 = vrcp.pop %v551
        %v616 = vmul.f32 %v608, %v614
        %v617 = vmul.f32 %v611, %v615
        %v618 = vmax.f32 %v616, 0.0
        %v619 = vmax.f32 %v617, 0.0
        %620 = vset.pattern.permute.xlu0 2
        %621 = vperm.xlu0 %620, %v437
        %v622 = vpop.permute.xlu0 %621
        %624 = vset.pattern.permute.xlu0 2
        %625 = vperm.xlu0 %624, %v440
        %v626 = vpop.permute.xlu0 %625
        %v628 = vlaneseq
        %v629 = vshrl.u32 %v628, 7
        %v630 = vsub.s32 2, %v629
        %v631 = vrot.slane %v482, %v630
        %v632 = vadd.f32 %v622, %v631
        %v633 = vadd.f32 %v626, %v631
        %v634 = vmul.f32 %v632, 0.2
        %v635 = vmul.f32 %v633, 0.2
        %v636 = vmax.f32 %v632, %v634
        %v637 = vmax.f32 %v633, %v635
        %v638 = vsel %vm507, %v636, -1e+30
        %v639 = vsel %vm508, %v637, -1e+30
        %640 = vset.pattern.permute.xlu0 3
        %641 = vperm.xlu0 %640, %v437
        %v642 = vpop.permute.xlu0 %641
        %644 = vset.pattern.permute.xlu0 3
        %645 = vperm.xlu0 %644, %v440
        %v646 = vpop.permute.xlu0 %645
        %v648 = vlaneseq
        %v649 = vshrl.u32 %v648, 7
        %v650 = vsub.s32 3, %v649
        %v651 = vrot.slane %v482, %v650
        %v652 = vadd.f32 %v642, %v651
        %v653 = vadd.f32 %v646, %v651
        %v654 = vmul.f32 %v652, 0.2
        %v655 = vmul.f32 %v653, 0.2
        %v656 = vmax.f32 %v652, %v654
        %v657 = vmax.f32 %v653, %v655
        %v658 = vsel %vm529, %v656, %v638
        %v659 = vsel %vm530, %v657, %v639
        %v660 = vsel %vm533, %v658, -inf
        %661 = vmax.xlane.f32.xlu0 %v660
        %v662 = vpop.xlane.xlu0 %661
        %v663 = vsel %vm533, %v659, -inf
        %664 = vmax.xlane.f32.xlu0 %v663
        %v665 = vpop.xlane.xlu0 %664
        %v666 = vsub.f32 %v658, %v662
        %v667 = vsub.f32 %v659, %v665
        %v668 = vmul.f32 %v666, 1.442695
        %v669 = vpow.pop %v668
        %v670 = vmul.f32 %v667, 1.442695
        %v671 = vpow.pop %v670
        %v672 = vsel %vm533, %v669, 0.0
        %673 = vadd.xlane.f32.xlu0 %v672
        %v674 = vpop.xlane.xlu0 %673
        %v675 = vsel %vm533, %v671, 0.0
        %676 = vadd.xlane.f32.xlu0 %v675
        %v677 = vpop.xlane.xlu0 %676
        %v678 = vpack.c.bf16 %v671, %v669
        %679 = vrot.lane.b32.xlu0 %v564, 80
        %v680 = vpop.permute.xlu0 %679
        %v683 = vsel %vm533, %v678, 0
        %685 = vmatprep.subr.bf16.mxu0 0
        %686 = vmatpush1.bf16.msra.mxu0 0
        %687 = vmatprep.subr.bf16.mxu0 0
        %688 = vmatpush1.bf16.msra.mxu0 0
        %689 = vmatprep.subr.bf16.mxu0 0
        %690 = vmatpush1.bf16.msra.mxu0 0
        %691 = vmatprep.subr.bf16.mxu0 0
        %692 = vmatpush1.bf16.msra.mxu0 0
        %693 = vmatprep.subr.bf16.mxu0 0
        %694 = vmatpush1.bf16.msra.mxu0 0
        %695 = vmatprep.subr.bf16.mxu0 0
        %696 = vmatpush1.bf16.msra.mxu0 0
        %697 = vmatprep.subr.bf16.mxu0 0
        %698 = vmatpush1.bf16.msra.mxu0 0
        %699 = vmatprep.subr.bf16.mxu0 0
        %700 = vmatpush1.bf16.msra.mxu0 %v680
        %701 = vmatprep.subr.bf16.mxu0 0
        %702 = vmatpush2.bf16.msra.mxu0 0
        %703 = vmatprep.subr.bf16.mxu0 0
        %704 = vmatpush2.bf16.msra.mxu0 0
        %705 = vmatprep.subr.bf16.mxu0 0
        %706 = vmatpush2.bf16.msra.mxu0 0
        %707 = vmatprep.subr.bf16.mxu0 0
        %708 = vmatpush2.bf16.msra.mxu0 0
        %709 = vmatprep.subr.bf16.mxu0 0
        %710 = vmatpush2.bf16.msra.mxu0 0
        %711 = vmatprep.subr.bf16.mxu0 0
        %712 = vmatpush2.bf16.msra.mxu0 0
        %713 = vmatprep.subr.bf16.mxu0 0
        %714 = vmatpush2.bf16.msra.mxu0 0
        %715 = vmatprep.subr.bf16.mxu0 0
        %716 = vmatpush2.bf16.msra.mxu0 0
        %717 = vmatprep.mubr.bf16.mxu0 0
        %718 = vmatmul.mubr.bf16.gmra.mxu0 %v683
        %v719 = vpop.f32.mrf.mxu0
        %v720 = vadd.f32 0.0, %v719
        %v721 = vpop.f32.mrf.mxu0
        %v722 = vpop.f32.mrf.mxu0
        %v723 = vadd.f32 0.0, %v722
        %v724 = vpop.f32.mrf.mxu0
        %725 = vdwg.mxu0
        %v726 = vrcp.pop %v674
        %v727 = vrcp.pop %v677
        %v728 = vmul.f32 %v720, %v726
        %v729 = vmul.f32 %v723, %v727
        %v730 = vmax.f32 %v728, 0.0
        %v731 = vmax.f32 %v729, 0.0
        %734 = vrot.lane.b32.xlu0 %v730, 16
        %v735 = vpop.permute.xlu0 %734
        %736 = vrot.lane.b32.xlu0 %v731, 16
        %v737 = vpop.permute.xlu0 %736
        %v740 = vsel %vm533, %v618, %v735
        %v741 = vsel %vm533, %v619, %v737
        %742 = vst.msk [vmem:[%s274] sm:$0xff] %vm320, %v740
        %743 = vst.msk [vmem:[%s274 + $0x8] sm:$0xff] %vm320, %v741
        %s744 = sand.u32 %s169, 1
        %s745 = scalar_lea.sflag [#allocation3], %s744
        %s746 = sand.u32 %s169, 1
        %s747 = smul.addr %s746, 16
        %s748 = scalar_lea.vmem [#allocation2], %s747
        // Predicated region
        $region45: #{tpu_custom_call.1} parent=43 // pred_check
          %p749 = pneg %p179
        $region46: #{tpu_custom_call.1} parent=43 // pred_check_branch
          %751 = sbr.rel (%p749) target = $region48
        $region47: #{tpu_custom_call.1} parent=43 // pred_region
          %s753 = ssub.s32 256, 256
          %754 = vsyncadd %s745, %s753
          %s755 = smul.addr %s20, 2
          %s756 = smul.addr %s755, 128
          %s757 = scalar_lea.hbm %s6, %s756
          %s758 = sshll.u32 %s748, 4
          %s759 = int_to_ptr.vmem [resolvable:$true] %s758
          %764 = dma.vmem_to_hbm [thread:$0]  %s759, 256, %s757, %s745, 128, 128, 8
        $region48: #{tpu_custom_call.1} parent=43 // pred_fallthru
          _
      $region44: #{tpu_custom_call.1} parent=5 // pred_fallthru
        _
      %p765 = scmp.le.s32.totalorder 2, %s15
      // Predicated region
      $region49: #{tpu_custom_call.1} parent=5 // pred_check
        %p766 = pneg %p765
      $region50: #{tpu_custom_call.1} parent=5 // pred_check_branch
        %768 = sbr.rel (%p766) target = $region52
      $region51: #{tpu_custom_call.1} parent=5 // pred_region
        %s769 = ssub.s32 %s15, 2
        // Predicated region
        $region53: #{tpu_custom_call.1} parent=51 // pred_check
          %p770 = pneg %p185
        $region54: #{tpu_custom_call.1} parent=51 // pred_check_branch
          %772 = sbr.rel (%p770) target = $region56
        $region55: #{tpu_custom_call.1} parent=51 // pred_region
          %s773 = sand.u32 %s170, 1
          %s774 = scalar_lea.sflag [#allocation3], %s773
          %s775 = sand.u32 %s170, 1
          %s776 = smul.addr %s775, 16
          %s777 = scalar_lea.vmem [#allocation2], %s776
          %778 = dma.done %s774, 256
        $region56: #{tpu_custom_call.1} parent=51 // pred_fallthru
          _
      $region52: #{tpu_custom_call.1} parent=5 // pred_fallthru
        _
    $region6: #{tpu_custom_call.1} parent=1 // loop_footer
      %s19 = sadd.s32 1, %s15
    $region7: #{tpu_custom_call.1} parent=1 // loop_footer_branch
      %14 = sbr.rel target = $region3
    $region8: #{tpu_custom_call.1} parent=1 // loop_exit
      _
    %779 = vsyncpa [#allocation3], 1
    %s780 = scalar_lea.sflag [#allocation3], 1
    %781 = vsyncpa %s780, 1

</llo_original>
